<compile_context>
chip_gen: v7x
topology: tpu7x:2x2x1
jax: 0.10.0
libtpu: 0.0.40
codegen_flags: <defaults>
</compile_context>

<pallas_src>
import functools

import jax
import jax.numpy as jnp
from jax.experimental import pallas as pl
from jax.experimental.pallas import tpu as pltpu

# AsymmetricLossOptimized.__init__ defaults.
GAMMA_NEG = 4.0
GAMMA_POS = 1.0
CLIP = 0.05
EPS = 1e-8

_LANES = 128


def _sublane_granularity(dtype):
    """Row granularity for a legal BlockSpec: f32->8, bf16->16, int8/bool->32."""
    itemsize = jnp.dtype(dtype).itemsize
    return 8 * max(1, 4 // max(1, itemsize))


def _target_block_bytes():
    """Per-input VMEM block target (keeps 2 inputs x 2 buffers + f32 temps
    inside the default scoped VMEM: 16 MiB v5e, 32 MiB v6e/v7x)."""
    try:
        kind = jax.devices()[0].device_kind.lower()
    except Exception:
        kind = ""
    if "v6" in kind or "v7" in kind or "trillium" in kind:
        return 2 << 20
    return 1 << 20


def _asl_kernel(x_ref, y_ref, out_ref, *, tile_r, width, valid_rows,
                has_ragged, apply_sigmoid):
    """One (tile_r, width) lane-dense tile -> one (sub, 128) partial block."""
    x = x_ref[...].astype(jnp.float32)
    if apply_sigmoid:
        # The PyTorch module uses x directly; enable only for raw logits.
        x = jax.nn.sigmoid(x)

    y = y_ref[...]
    if y.dtype == jnp.bool_:
        is_pos = y
    elif jnp.issubdtype(y.dtype, jnp.integer):
        is_pos = y > 0
    else:
        is_pos = y.astype(jnp.float32) > 0.5

    # xs_neg = clamp(1 - x + clip, max=1)
    xs_neg = jnp.minimum((1.0 - x) + CLIP, 1.0)

    # Single log:  y*log(xs_pos) + (1-y)*log(xs_neg) == log(select(y, ...)).
    p = jnp.where(is_pos, x, xs_neg)
    logp = jnp.log(jnp.maximum(p, EPS))

    # Focal weight: base = 1 - xs_pos*y - xs_neg*(1-y) = 1 - p
    #   y=1 -> base**1 ; y=0 -> base**4 = (base^2)^2.
    base = 1.0 - p
    b2 = base * base
    w = jnp.where(is_pos, base, b2 * b2)

    loss = logp * w  # (tile_r, width)

    def fold(v):
        # Lane-group fold: width -> 128 (tile-aligned slices, pure VPU adds).
        acc = v[:, 0:_LANES]
        for j in range(1, width // _LANES):
            acc = acc + v[:, j * _LANES:(j + 1) * _LANES]
        # Sublane fold: tile_r -> 8 (free re-indexing of sublane tiles).
        if tile_r % 8 == 0:
            acc = acc.reshape(tile_r // 8, 8, _LANES).sum(axis=0)
        return acc

    if has_ragged:
        # Only the last grid step can see out-of-bounds (garbage) rows.
        i = pl.program_id(0)
        is_last = i == pl.num_programs(0) - 1

        @pl.when(is_last)
        def _():
            rid = jax.lax.broadcasted_iota(jnp.int32, (tile_r, 1), 0)
            ok = (i * tile_r + rid) < valid_rows
            out_ref[0] = fold(jnp.where(ok, loss, 0.0))

        @pl.when(jnp.logical_not(is_last))
        def _():
            out_ref[0] = fold(loss)
    else:
        out_ref[0] = fold(loss)


@functools.partial(jax.jit, static_argnames=("apply_sigmoid",))
def asymmetric_loss(x, y, apply_sigmoid=False):
    """-sum(asymmetric loss) over x, y of shape [B, C] (binary multi-label y)."""
    assert x.shape == y.shape, (x.shape, y.shape)
    n = 1
    for d in x.shape:
        n *= d

    xf = x.reshape(-1)
    yf = y.reshape(-1)

    # Lane-dense slab width: largest of {512, 256, 128} dividing N -> free
    # row-major reshape (no copy). Otherwise pad by < 128 zero elements
    # (zero (x, y) pairs contribute exactly zero loss).
    width = None
    for cand in (512, 256, 128):
        if n >= cand and n % cand == 0:
            width = cand
            break
    if width is None:
        width = _LANES
        pad = (-n) % width
        xf = jnp.pad(xf, (0, pad))
        yf = jnp.pad(yf, (0, pad))

    rows = xf.shape[0] // width
    x2 = xf.reshape(rows, width)
    y2 = yf.reshape(rows, width)

    gran = max(_sublane_granularity(x2.dtype), _sublane_granularity(y2.dtype))
    max_item = max(jnp.dtype(x2.dtype).itemsize, jnp.dtype(y2.dtype).itemsize)

    if rows <= gran:
        # Tiny input: one full-extent block (always a legal BlockSpec).
        tile_r = rows
    else:
        max_tile = (rows // gran) * gran
        target = max(gran,
                     (_target_block_bytes() // (width * max_item)) // gran * gran)
        tile_r = min(target, max_tile)
        # Megacore (v7x): non-trivial problems should have >= 2 grid steps.
        if rows * width * max_item > (2 << 20) and pl.cdiv(rows, tile_r) < 2:
            half = ((rows + 1) // 2 + gran - 1) // gran * gran
            tile_r = max(gran, min(tile_r, half, max_tile))

    num_tiles = pl.cdiv(rows, tile_r)
    has_ragged = (rows % tile_r) != 0
    sub = 8 if tile_r % 8 == 0 else tile_r

    kernel = functools.partial(
        _asl_kernel,
        tile_r=tile_r,
        width=width,
        valid_rows=rows,
        has_ragged=has_ragged,
        apply_sigmoid=apply_sigmoid,
    )

    partials = pl.pallas_call(
        kernel,
        out_shape=jax.ShapeDtypeStruct((num_tiles, sub, _LANES), jnp.float32),
        grid=(num_tiles,),
        in_specs=[
            pl.BlockSpec((tile_r, width), lambda i: (i, 0)),
            pl.BlockSpec((tile_r, width), lambda i: (i, 0)),
        ],
        out_specs=pl.BlockSpec((1, sub, _LANES), lambda i: (i, 0, 0)),
        compiler_params=pltpu.CompilerParams(
            # No carried state -> megacore-parallel grid.
            dimension_semantics=("parallel",),
        ),
    )(x2, y2)

    # Tiny final reduction over lane-dense partials, then negation.
    return -jnp.sum(partials)


def asymmetric_loss_ref(x, y, apply_sigmoid=False):
    """Pure-JAX reference mirroring the PyTorch forward exactly."""
    x = x.astype(jnp.float32)
    y = y.astype(jnp.float32)
    if apply_sigmoid:
        x = jax.nn.sigmoid(x)
    anti = 1.0 - y
    xs_pos = x
    xs_neg = jnp.minimum(1.0 - x + CLIP, 1.0)
    loss = y * jnp.log(jnp.maximum(xs_pos, EPS)) + anti * jnp.log(
        jnp.maximum(xs_neg, EPS))
    w = jnp.power(1.0 - xs_pos * y - xs_neg * anti,
                  GAMMA_POS * y + GAMMA_NEG * anti)
    return -jnp.sum(loss * w)


if __name__ == "__main__":
    key = jax.random.PRNGKey(0)

    # Small shapes exercising: tiny full-extent block, padded non-128 case,
    # and the lane-dense ragged (masked last tile) case.
    shapes = [(2, 16), (50, 80), (200, 128)]
    for idx, (B, C) in enumerate(shapes):
        k1, k2 = jax.random.split(jax.random.fold_in(key, idx))
        # x: probabilities in (0,1) (module uses x directly); y: binarized.
        x = jax.nn.sigmoid(jax.random.normal(k1, (B, C), dtype=jnp.float32))
        y = (jax.random.uniform(k2, (B, C)) > 0.5).astype(jnp.float32)

        out = jax.block_until_ready(asymmetric_loss(x, y))
        ref = asymmetric_loss_ref(x, y)
        assert jnp.allclose(out, ref, rtol=1e-4, atol=1e-4), (B, C, out, ref)

    print("KERNEL_OK")
</pallas_src>

<mosaic_0001>
module attributes {stable_mosaic.version = 11 : i64} {
  func.func @_asl_kernel(%arg0: i32, %arg1: memref<1x128xf32, #tpu.memory_space<vmem>>, %arg2: memref<1x128xf32, #tpu.memory_space<vmem>>, %arg3: memref<1x1x128xf32, #tpu.memory_space<vmem>>) attributes {dimension_semantics = [#tpu.dimension_semantics<parallel>], iteration_bounds = array<i64: 1>, scalar_prefetch = 0 : i64, scratch_operands = 0 : i64, tpu.core_type = #tpu.core_type<tc>, window_params = [{transform_indices = @transform_0, window_bounds = array<i64: 1, 128>}, {transform_indices = @transform_1, window_bounds = array<i64: 1, 128>}, {transform_indices = @transform_2, window_bounds = array<i64: 1, 1, 128>}]} {
    %c0 = arith.constant 0 : index
    %c0_0 = arith.constant 0 : index
    %0 = vector.load %arg1[%c0, %c0_0] : memref<1x128xf32, #tpu.memory_space<vmem>>, vector<1x128xf32>
    %c0_1 = arith.constant 0 : index
    %c0_2 = arith.constant 0 : index
    %1 = vector.load %arg2[%c0_1, %c0_2] : memref<1x128xf32, #tpu.memory_space<vmem>>, vector<1x128xf32>
    %cst = arith.constant 5.000000e-01 : f32
    %2 = vector.broadcast %cst : f32 to vector<1x128xf32>
    %3 = arith.cmpf ogt, %1, %2 : vector<1x128xf32>
    %cst_3 = arith.constant 1.000000e+00 : f32
    %4 = vector.broadcast %cst_3 : f32 to vector<1x128xf32>
    %5 = arith.subf %4, %0 : vector<1x128xf32>
    %cst_4 = arith.constant 5.000000e-02 : f32
    %6 = vector.broadcast %cst_4 : f32 to vector<1x128xf32>
    %7 = arith.addf %5, %6 : vector<1x128xf32>
    %cst_5 = arith.constant 1.000000e+00 : f32
    %8 = vector.broadcast %cst_5 : f32 to vector<1x128xf32>
    %9 = arith.minimumf %7, %8 : vector<1x128xf32>
    %10 = arith.select %3, %0, %9 : vector<1x128xi1>, vector<1x128xf32>
    %cst_6 = arith.constant 9.99999993E-9 : f32
    %11 = vector.broadcast %cst_6 : f32 to vector<1x128xf32>
    %12 = arith.maximumf %10, %11 : vector<1x128xf32>
    %13 = math.log %12 : vector<1x128xf32>
    %cst_7 = arith.constant 1.000000e+00 : f32
    %14 = vector.broadcast %cst_7 : f32 to vector<1x128xf32>
    %15 = arith.subf %14, %10 : vector<1x128xf32>
    %16 = arith.mulf %15, %15 : vector<1x128xf32>
    %17 = arith.mulf %16, %16 : vector<1x128xf32>
    %18 = arith.select %3, %15, %17 : vector<1x128xi1>, vector<1x128xf32>
    %19 = arith.mulf %13, %18 : vector<1x128xf32>
    %c0_8 = arith.constant 0 : index
    %c0_9 = arith.constant 0 : index
    %c0_10 = arith.constant 0 : index
    %20 = vector.load %arg3[%c0_8, %c0_9, %c0_10] : memref<1x1x128xf32, #tpu.memory_space<vmem>>, vector<1x1x128xf32>
    %21 = vector.shape_cast %20 : vector<1x1x128xf32> to vector<1x128xf32>
    %22 = vector.shape_cast %19 : vector<1x128xf32> to vector<1x1x128xf32>
    tpu.vector_store %arg3[%c0_8, %c0_9, %c0_10], %22 {strides = array<i32>} : memref<1x1x128xf32, #tpu.memory_space<vmem>>, vector<1x1x128xf32>,
    return
  }
  func.func @transform_0(%arg0: i32) -> (i32, i32) {
    %c0_i32 = arith.constant 0 : i32
    %c0_i32_0 = arith.constant 0 : i32
    return %arg0, %c0_i32 : i32, i32
  }
  func.func @transform_1(%arg0: i32) -> (i32, i32) {
    %c0_i32 = arith.constant 0 : i32
    %c0_i32_0 = arith.constant 0 : i32
    return %arg0, %c0_i32 : i32, i32
  }
  func.func @transform_2(%arg0: i32) -> (i32, i32, i32) {
    %c0_i32 = arith.constant 0 : i32
    %c0_i32_0 = arith.constant 0 : i32
    %c0_i32_1 = arith.constant 0 : i32
    return %arg0, %c0_i32, %c0_i32_0 : i32, i32, i32
  }
}

</mosaic_0001>

<llo_original>
// kernel: asymmetric_loss.1
$region0: #{asymmetric_loss.1}
  #allocation0 [shape = 'u32[]', space=smem, size = 0x4, offset = 0x4, fixed_abs, tag = 'smem constant byte address 0x4 - core index']
  #allocation1 [shape = 'u32[144,128]{1,0:T(1,128)}', space=vmem, size = 0x12000, scoped, tag = 'internal scratch']
  %s0 = inlined_call_operand.vmem [shape: f32[1,128], index: 0, kind: input, shape index: {}]
  %s1 = inlined_call_operand.vmem [shape: f32[1,128], index: 1, kind: input, shape index: {}]
  %s2 = inlined_call_operand.vmem [shape: f32[1,1,128], index: 2, kind: output, shape index: {}]
  %s3 = sld [smem:[#allocation0]]
  $region18: #{asymmetric_loss.1} parent=0
    _
  %s5 = ssub.s32 1, %s3
  %s6 = scalar_select 0, %s5, %s3
  // Predicated region
  $region2: #{asymmetric_loss.1} parent=0 // pred_check
    _
  $region3: #{asymmetric_loss.1} parent=0 // pred_check_branch
    %8 = sbr.rel (0) target = $region5
  $region4: #{asymmetric_loss.1} parent=0 // pred_region
    _
  $region5: #{asymmetric_loss.1} parent=0 // pred_fallthru
    _
  // Predicated region
  $region6: #{asymmetric_loss.1} parent=0 // pred_check
    _
  $region7: #{asymmetric_loss.1} parent=0 // pred_check_branch
    %10 = sbr.rel (0) target = $region9
  $region8: #{asymmetric_loss.1} parent=0 // pred_region
    _
  $region9: #{asymmetric_loss.1} parent=0 // pred_fallthru
    _
  %v11 = vld [vmem:[%s0] sm:$0x1]
  %v12 = vld [vmem:[%s1] sm:$0x1]
  %vm13 = vcmp.gt.f32.partialorder %v12, 0.5
  %v14 = vsub.f32 1.0, %v11
  %v15 = vadd.f32 %v14, 0.05
  %v16 = vmin.f32 %v15, 1.0
  %v17 = vsel %vm13, %v11, %v16
  %v18 = vmax.f32 %v17, 1e-08
  %v19 = vlog2.pop %v18
  %v20 = vmul.f32 %v19, 0.6931472
  %v21 = vsub.f32 1.0, %v17
  %v22 = vmul.f32 %v21, %v21
  %v23 = vmul.f32 %v22, %v22
  %v24 = vsel %vm13, %v21, %v23
  %v25 = vmul.f32 %v20, %v24
  %26 = vst [vmem:[%s2] sm:$0x1] %v25
  // Predicated region
  $region10: #{asymmetric_loss.1} parent=0 // pred_check
    _
  $region11: #{asymmetric_loss.1} parent=0 // pred_check_branch
    %28 = sbr.rel (0) target = $region13
  $region12: #{asymmetric_loss.1} parent=0 // pred_region
    _
  $region13: #{asymmetric_loss.1} parent=0 // pred_fallthru
    _
  // Predicated region
  $region14: #{asymmetric_loss.1} parent=0 // pred_check
    _
  $region15: #{asymmetric_loss.1} parent=0 // pred_check_branch
    %30 = sbr.rel (0) target = $region17
  $region16: #{asymmetric_loss.1} parent=0 // pred_region
    _
  $region17: #{asymmetric_loss.1} parent=0 // pred_fallthru
    _

</llo_original>
